<compile_context>
chip_gen: v7x
topology: tpu7x:2x2x1
jax: 0.10.0
libtpu: 0.0.40
codegen_flags: <defaults>
</compile_context>

<pallas_src>
import jax
import jax.numpy as jnp
from jax.experimental import pallas as pl
from jax.experimental.pallas import tpu as pltpu


_LANE = 512                        # lane-dense fallback width (multiple of 128)
_BLOCK_BYTES = 8 * 1024 * 1024     # 8 MiB tiles: 2 in-bufs + 2 out-bufs = 32 MiB resident
_SPLIT_BYTES = 2 * 1024 * 1024     # above this, force >= 2 blocks (v7x megacore sharding)
_VMEM_LIMIT = 40 * 1024 * 1024     # 4 * block + slack; headroom on v7x (64 MiB VMEM)


def _identity_copy_kernel(x_ref, o_ref):
    # Straight copy of the current tile (identity forward pass).
    o_ref[...] = x_ref[...]


def _dma_identity_kernel(x_hbm, o_hbm, sem):
    # One whole-array HBM->HBM DMA: no lane/sublane constraints, no padding,
    # data never touches VMEM or the core's vector load/store slots.
    cp = pltpu.make_async_copy(x_hbm, o_hbm, sem)
    cp.start()
    cp.wait()


def _round_up(a, b):
    return ((a + b - 1) // b) * b


def _ceil_div(a, b):
    return (a + b - 1) // b


def _sublane_multiple(dtype):
    # Rows per sublane tile: 8 for 32-bit, 16 for 16-bit, 32 for 8-bit dtypes.
    itemsize = jnp.dtype(dtype).itemsize
    return max(8, 32 // max(1, itemsize))


def _choose_tile_rows(rows, lane, itemsize, sub):
    row_bytes = lane * itemsize
    total_bytes = rows * row_bytes
    # Rows per block from the byte budget, rounded down to the sublane multiple.
    target_rows = max(sub, (_BLOCK_BYTES // row_bytes) // sub * sub)
    if rows <= target_rows:
        if total_bytes > _SPLIT_BYTES:
            # Ensure >= 2 blocks so the "parallel" axis shards across both
            # v7x TensorCores (per-TC HBM bandwidth).
            return min(rows, _round_up(_ceil_div(rows, 2), sub))
        return rows            # single block == full array rows (always legal)
    return target_rows


def _tiled_copy(x2d, n_bytes):
    rows, lane = x2d.shape
    itemsize = jnp.dtype(x2d.dtype).itemsize
    sub = _sublane_multiple(x2d.dtype)
    tile_r = _choose_tile_rows(rows, lane, itemsize, sub)
    # Boundary block (if rows % tile_r != 0) is masked by Pallas: no padding,
    # no trailing slice -- exactly 2n bytes of HBM traffic.
    grid = (_ceil_div(rows, tile_r),)

    return pl.pallas_call(
        _identity_copy_kernel,
        out_shape=jax.ShapeDtypeStruct((rows, lane), x2d.dtype),
        grid_spec=pltpu.PrefetchScalarGridSpec(
            num_scalar_prefetch=0,
            grid=grid,
            in_specs=[pl.BlockSpec((tile_r, lane), lambda i: (i, 0))],
            out_specs=pl.BlockSpec((tile_r, lane), lambda i: (i, 0)),
        ),
        compiler_params=pltpu.CompilerParams(
            dimension_semantics=("parallel",),
            vmem_limit_bytes=_VMEM_LIMIT,
        ),
        cost_estimate=pl.CostEstimate(
            flops=0, transcendentals=0, bytes_accessed=2 * n_bytes),
    )(x2d)


def _dma_copy(x, n_bytes):
    return pl.pallas_call(
        _dma_identity_kernel,
        out_shape=jax.ShapeDtypeStruct(x.shape, x.dtype),
        in_specs=[pl.BlockSpec(memory_space=pl.ANY)],
        out_specs=pl.BlockSpec(memory_space=pl.ANY),
        scratch_shapes=[pltpu.SemaphoreType.DMA(())],
        cost_estimate=pl.CostEstimate(
            flops=0, transcendentals=0, bytes_accessed=2 * n_bytes),
    )(x)


def _pallas_identity_copy(x):
    """Materialized identity copy at the HBM roofline (exactly 2n bytes)."""
    n = int(x.size)
    if n == 0:
        return x
    itemsize = jnp.dtype(x.dtype).itemsize
    n_bytes = n * itemsize
    sub = _sublane_multiple(x.dtype)

    # Fast path 1: the tensor's own last dim is lane-dense -- use it directly
    # (collapse leading dims; metadata-only reshape for contiguous buffers).
    if x.ndim >= 2:
        last = int(x.shape[-1])
        if last % 128 == 0 and sub * last * itemsize <= _BLOCK_BYTES:
            rows = n // last
            out2d = _tiled_copy(x.reshape(rows, last), n_bytes)
            return out2d.reshape(x.shape)

    # Fast path 2: flat size is a multiple of the lane width -> (rows, 512).
    if n % _LANE == 0:
        out2d = _tiled_copy(x.reshape(n // _LANE, _LANE), n_bytes)
        return out2d.reshape(x.shape)

    # Ragged sizes: one whole-array HBM->HBM DMA (no pad, no slice).
    if x.ndim == 0:
        return _dma_copy(x.reshape(1), n_bytes).reshape(x.shape)
    return _dma_copy(x, n_bytes)


def debug_forward(x, *, materialize=False):
    """Forward pass of the Debug module.

    Matches the PyTorch semantics: raises AttributeError if x is None,
    otherwise returns x unchanged.  The default (fast) path returns x with no
    kernel launch -- the optimal implementation of an identity.  Set
    materialize=True to force a physical copy through the Pallas kernels.
    """
    if x is None:
        raise AttributeError('failed here')
    if not materialize:
        return x
    return _pallas_identity_copy(x)


if __name__ == "__main__":
    key = jax.random.PRNGKey(0)

    # Small NCHW input consistent with a typical conv-net debug hook.
    x = jax.random.normal(key, (2, 4, 16, 16), dtype=jnp.float32)

    # Fast path (true identity, no kernel).
    y_fast = debug_forward(x)
    jax.block_until_ready(y_fast)
    assert y_fast.shape == x.shape and y_fast.dtype == x.dtype
    assert bool(jnp.all(y_fast == x))

    # Materialized path: exercises the lane-dense tiled copy (flatten -> 512).
    y = debug_forward(x, materialize=True)
    jax.block_until_ready(y)
    assert y.shape == x.shape and y.dtype == x.dtype
    assert bool(jnp.all(y == x))

    # Ragged / sub-32-bit dtype: whole-array HBM->HBM DMA path (no pad/slice).
    x2 = jax.random.normal(jax.random.PRNGKey(1), (3, 5, 7)).astype(jnp.bfloat16)
    y2 = debug_forward(x2, materialize=True)
    jax.block_until_ready(y2)
    assert y2.shape == x2.shape and y2.dtype == x2.dtype
    assert bool(jnp.all(y2 == x2))

    # Lane-dense last dim + >2 MiB: split into >=2 blocks with a masked
    # boundary block (rows not a multiple of tile_r), no padding.
    x3 = jax.random.normal(jax.random.PRNGKey(2), (2100, 256), dtype=jnp.float32)
    y3 = debug_forward(x3, materialize=True)
    jax.block_until_ready(y3)
    assert y3.shape == x3.shape and y3.dtype == x3.dtype
    assert bool(jnp.all(y3 == x3))

    # None-guard semantics of the original module.
    try:
        debug_forward(None)
        raise RuntimeError("expected AttributeError")
    except AttributeError:
        pass

    print("KERNEL_OK")
</pallas_src>

<mosaic_0001>
module attributes {stable_mosaic.version = 11 : i64} {
  func.func @_identity_copy_kernel(%arg0: i32, %arg1: memref<4x512xf32, #tpu.memory_space<vmem>>, %arg2: memref<4x512xf32, #tpu.memory_space<vmem>>) attributes {dimension_semantics = [#tpu.dimension_semantics<parallel>], iteration_bounds = array<i64: 1>, scalar_prefetch = 0 : i64, scratch_operands = 0 : i64, tpu.core_type = #tpu.core_type<tc>, window_params = [{transform_indices = @transform_0, window_bounds = array<i64: 4, 512>}, {transform_indices = @transform_1, window_bounds = array<i64: 4, 512>}]} {
    %c0 = arith.constant 0 : index
    %c0_0 = arith.constant 0 : index
    %0 = vector.load %arg1[%c0, %c0_0] : memref<4x512xf32, #tpu.memory_space<vmem>>, vector<4x512xf32>
    %c0_1 = arith.constant 0 : index
    %c0_2 = arith.constant 0 : index
    %1 = vector.load %arg2[%c0_1, %c0_2] : memref<4x512xf32, #tpu.memory_space<vmem>>, vector<4x512xf32>
    tpu.vector_store %arg2[%c0_1, %c0_2], %0 {strides = array<i32>} : memref<4x512xf32, #tpu.memory_space<vmem>>, vector<4x512xf32>,
    return
  }
  func.func @transform_0(%arg0: i32) -> (i32, i32) {
    %c0_i32 = arith.constant 0 : i32
    %c0_i32_0 = arith.constant 0 : i32
    return %arg0, %c0_i32 : i32, i32
  }
  func.func @transform_1(%arg0: i32) -> (i32, i32) {
    %c0_i32 = arith.constant 0 : i32
    %c0_i32_0 = arith.constant 0 : i32
    return %arg0, %c0_i32 : i32, i32
  }
}

</mosaic_0001>

<llo_original>
// kernel: tpu_custom_call.1
$region0: #{tpu_custom_call.1}
  #allocation0 [shape = 'u32[]', space=smem, size = 0x4, offset = 0x4, fixed_abs, tag = 'smem constant byte address 0x4 - core index']
  #allocation1 [shape = 'u32[144,128]{1,0:T(1,128)}', space=vmem, size = 0x12000, scoped, tag = 'internal scratch']
  %s0 = inlined_call_operand.hbm [shape: f32[4,512], index: 0, kind: input, shape index: {}]
  %s1 = inlined_call_operand.hbm [shape: f32[4,512], index: 1, kind: output, shape index: {}]
  %s2 = sld [smem:[#allocation0]]
  $region18: #{tpu_custom_call.1} parent=0
    _
  %s4 = ssub.s32 1, %s2
  %s5 = scalar_select 0, %s4, %s2
  $region1: #{tpu_custom_call.1} parent=0
    #allocation2 [shape = 'u8[8192]{0}', space=vmem, size = 0x2000, scoped, tag = 'input window, operand 0, single buffered']
    #allocation3 [shape = 's32[1]{0}', space=sflag, size = 0x4, scoped, tag = 'scoped memory for tpu_custom_call.1']
    #allocation4 [shape = 's32[1]{0}', space=sflag, size = 0x4, scoped, tag = 'scoped memory for tpu_custom_call.1']
    #allocation5 [shape = 'u8[8192]{0}', space=vmem, size = 0x2000, scoped, tag = 'output window, operand 0, single buffered']
    %6 = vsyncpa [#allocation3], 0
    %7 = vsyncpa [#allocation4], 0
    // Predicated region
    $region2: #{tpu_custom_call.1} parent=1 // pred_check
      _
    $region3: #{tpu_custom_call.1} parent=1 // pred_check_branch
      %9 = sbr.rel (0) target = $region5
    $region4: #{tpu_custom_call.1} parent=1 // pred_region
      %s11 = ssub.s32 256, 256
      %12 = vsyncadd [#allocation3], %s11
      %s14 = sshll.u32 [#allocation2], 4
      %s15 = int_to_ptr.vmem [resolvable:$true] %s14
      %17 = dma.hbm_to_vmem [thread:$0]  %s0, 256, %s15, [#allocation3]
    $region5: #{tpu_custom_call.1} parent=1 // pred_fallthru
      _
    // Predicated region
    $region6: #{tpu_custom_call.1} parent=1 // pred_check
      _
    $region7: #{tpu_custom_call.1} parent=1 // pred_check_branch
      %19 = sbr.rel (0) target = $region9
    $region8: #{tpu_custom_call.1} parent=1 // pred_region
      %20 = dma.done [#allocation3], 256
    $region9: #{tpu_custom_call.1} parent=1 // pred_fallthru
      _
    %v21 = vld [vmem:[#allocation2] sm:$0xff]
    %v22 = vld [vmem:[#allocation2 + $0x8] sm:$0xff]
    %23 = vst [vmem:[#allocation5] sm:$0xff] %v21
    %24 = vst [vmem:[#allocation5 + $0x8] sm:$0xff] %v22
    // Predicated region
    $region10: #{tpu_custom_call.1} parent=1 // pred_check
      _
    $region11: #{tpu_custom_call.1} parent=1 // pred_check_branch
      %26 = sbr.rel (0) target = $region13
    $region12: #{tpu_custom_call.1} parent=1 // pred_region
      %s28 = ssub.s32 256, 256
      %29 = vsyncadd [#allocation4], %s28
      %s31 = sshll.u32 [#allocation5], 4
      %s32 = int_to_ptr.vmem [resolvable:$true] %s31
      %34 = dma.vmem_to_hbm [thread:$0]  %s32, 256, %s1, [#allocation4]
    $region13: #{tpu_custom_call.1} parent=1 // pred_fallthru
      _
    // Predicated region
    $region14: #{tpu_custom_call.1} parent=1 // pred_check
      _
    $region15: #{tpu_custom_call.1} parent=1 // pred_check_branch
      %36 = sbr.rel (0) target = $region17
    $region16: #{tpu_custom_call.1} parent=1 // pred_region
      %37 = dma.done [#allocation4], 256
    $region17: #{tpu_custom_call.1} parent=1 // pred_fallthru
      _
    %38 = vsyncpa [#allocation3], 1
    %39 = vsyncpa [#allocation4], 1

</llo_original>
